<compile_context>
chip_gen: v7x
topology: tpu7x:2x2x1
jax: 0.10.0
libtpu: 0.0.40
codegen_flags: <defaults>
</compile_context>

<pallas_src>
import jax
import jax.numpy as jnp
import numpy as np
from jax.experimental import pallas as pl
from jax.experimental.pallas import tpu as pltpu


def _round_up(x, m):
    return ((x + m - 1) // m) * m


def _token_embedding_kernel(x_ref, w_ref, b_ref, o_ref):
    # x_ref: (bt, L, C)   w_ref: (3C, Dp)   b_ref: (1, Dp)   o_ref: (bt, L, Dp)
    bt, seq_len, c_in = x_ref.shape
    d_pad = o_ref.shape[-1]

    x = x_ref[...]                                            # (bt, L, C)
    # Circular neighbours along the sequence (sublane) axis; shifts non-negative.
    x_prev = pltpu.roll(x, shift=1, axis=1)                   # x[(l-1) mod L]
    x_next = pltpu.roll(x, shift=seq_len - 1, axis=1)         # x[(l+1) mod L]
    xcat = jnp.concatenate([x_prev, x, x_next], axis=-1)      # (bt, L, 3C)

    # Single fused MXU matmul over all batches and all three taps (M = bt*L).
    y = jnp.dot(xcat.reshape(bt * seq_len, 3 * c_in), w_ref[...],
                preferred_element_type=jnp.float32)           # (bt*L, Dp) f32
    y = y + b_ref[...]                                        # one bias add
    o_ref[...] = y.reshape(bt, seq_len, d_pad).astype(o_ref.dtype)


def token_embedding(x, weight, bias, *, max_batch_tile=128, vmem_limit_bytes=None):
    """x: (B, L, C_in); weight: (D, C_in, 3) (PyTorch Conv1d layout); bias: (D,)."""
    B, L, C = x.shape
    D = weight.shape[0]

    # Keep bf16 activations as bf16 (bandwidth-bound op); ints get promoted.
    x_dtype = x.dtype if jnp.issubdtype(x.dtype, jnp.floating) else jnp.float32
    if x.dtype != x_dtype:
        x = x.astype(x_dtype)
    in_bytes = jnp.dtype(x_dtype).itemsize

    # Lane-dense output width (multiple of 128); sliced back at the end.
    Dp = _round_up(D, 128)

    # (D, C, 3) -> (3, C, D) -> (3C, D): rows are [tap0 | tap1 | tap2].
    w_stack = jnp.transpose(weight, (2, 1, 0)).reshape(3 * C, D).astype(x_dtype)
    b_row = bias.reshape(1, D).astype(jnp.float32)
    if Dp != D:
        w_stack = jnp.pad(w_stack, ((0, 0), (0, Dp - D)))
        b_row = jnp.pad(b_row, ((0, 0), (0, Dp - D)))

    # --- generation-aware VMEM budget ---------------------------------------
    phys_vmem = 128 * 1024 * 1024
    try:
        cap = getattr(pltpu.get_tpu_info(), "vmem_capacity_bytes", None)
        if cap:
            phys_vmem = int(cap)
    except Exception:
        pass
    two_tensorcores = phys_vmem <= 64 * 1024 * 1024   # v7x: 64 MiB / TC, 2 TCs
    if vmem_limit_bytes is None:
        # v5e/v6e (128 MiB phys) -> 96 MiB; v7x (64 MiB phys) -> 48 MiB.
        vmem_limit_bytes = min(96 * 1024 * 1024, (phys_vmem * 3) // 4)
    vmem_limit_bytes = int(vmem_limit_bytes)

    # --- lane-aware per-batch-item VMEM footprint ----------------------------
    Lp = _round_up(L, 8)
    Cp = _round_up(C, 128)
    C3p = _round_up(3 * C, 128)
    per_batch = (
        2 * Lp * Cp * in_bytes        # input block (double-buffered)
        + 2 * Lp * Dp * in_bytes      # output block (double-buffered)
        + 2 * Lp * Cp * in_bytes      # x_prev / x_next
        + Lp * C3p * in_bytes         # xcat
        + Lp * Dp * 4                 # f32 matmul accumulator
    )
    fixed = 2 * (3 * C) * Dp * in_bytes + Dp * 4      # resident weights + bias
    budget = int(vmem_limit_bytes * 0.75) - fixed     # headroom for compiler scratch
    bt = max(1, budget // per_batch)
    bt = int(min(bt, B, max_batch_tile))
    # Megacore (v7x): keep >= 4 grid steps so each TensorCore pipelines >= 2 blocks.
    if two_tensorcores and B >= 4:
        bt = min(bt, max(1, B // 4))
    grid = (pl.cdiv(B, bt),)

    out_dtype = x_dtype
    cost = pl.CostEstimate(
        flops=2 * B * L * 3 * C * D,
        transcendentals=0,
        bytes_accessed=(B * L * C * in_bytes
                        + B * L * D * jnp.dtype(out_dtype).itemsize
                        + 3 * C * D * in_bytes + D * 4),
    )

    out = pl.pallas_call(
        _token_embedding_kernel,
        out_shape=jax.ShapeDtypeStruct((B, L, Dp), out_dtype),
        grid_spec=pltpu.PrefetchScalarGridSpec(
            num_scalar_prefetch=0,
            grid=grid,
            in_specs=[
                pl.BlockSpec((bt, L, C), lambda g: (g, 0, 0)),
                pl.BlockSpec((3 * C, Dp), lambda g: (0, 0)),
                pl.BlockSpec((1, Dp), lambda g: (0, 0)),
            ],
            out_specs=pl.BlockSpec((bt, L, Dp), lambda g: (g, 0, 0)),
        ),
        compiler_params=pltpu.CompilerParams(
            dimension_semantics=("parallel",),
            vmem_limit_bytes=vmem_limit_bytes),
        cost_estimate=cost,
    )(x, w_stack, b_row)

    # TODO(synk): when d_model % 128 != 0 this slice is an extra HBM pass; keep the
    # padded Dp through the consumer (or fuse the slice) if this feeds another kernel.
    return out[..., :D] if Dp != D else out


def token_embedding_ref(x, weight, bias):
    """Pure-JAX reference of the circular Conv1d forward (channels-last)."""
    w_taps = jnp.transpose(weight, (2, 1, 0))                    # (3, C, D)
    x_prev = jnp.roll(x, 1, axis=1)
    x_next = jnp.roll(x, -1, axis=1)
    y = (jnp.einsum("blc,cd->bld", x_prev, w_taps[0])
         + jnp.einsum("blc,cd->bld", x, w_taps[1])
         + jnp.einsum("blc,cd->bld", x_next, w_taps[2]))
    return y + bias[None, None, :]


if __name__ == "__main__":
    B, L, C_IN, D_MODEL = 2, 16, 4, 32

    key = jax.random.PRNGKey(0)
    kx, kw, kb = jax.random.split(key, 3)

    x = jax.random.normal(kx, (B, L, C_IN), dtype=jnp.float32)

    # kaiming_normal_(mode='fan_in', nonlinearity='leaky_relu') for Conv1d
    # weight of shape (d_model, c_in, 3): fan_in = c_in * 3,
    # gain = sqrt(2 / (1 + 0.01**2)), std = gain / sqrt(fan_in)
    fan_in = C_IN * 3
    gain = float(np.sqrt(2.0 / (1.0 + 0.01 ** 2)))
    std = gain / float(np.sqrt(fan_in))
    weight = std * jax.random.normal(kw, (D_MODEL, C_IN, 3), dtype=jnp.float32)

    # PyTorch default Conv1d bias init: U(-1/sqrt(fan_in), 1/sqrt(fan_in))
    bound = 1.0 / float(np.sqrt(fan_in))
    bias = jax.random.uniform(kb, (D_MODEL,), minval=-bound, maxval=bound,
                              dtype=jnp.float32)

    out = token_embedding(x, weight, bias)
    out = jax.block_until_ready(out)

    ref = token_embedding_ref(x, weight, bias)
    np.testing.assert_allclose(np.asarray(out), np.asarray(ref),
                               rtol=1e-5, atol=1e-5)

    print("KERNEL_OK")
</pallas_src>

<mosaic_0001>
module attributes {stable_mosaic.version = 11 : i64} {
  func.func @_token_embedding_kernel(%arg0: i32, %arg1: memref<2x16x4xf32, #tpu.memory_space<vmem>>, %arg2: memref<12x128xf32, #tpu.memory_space<vmem>>, %arg3: memref<1x128xf32, #tpu.memory_space<vmem>>, %arg4: memref<2x16x128xf32, #tpu.memory_space<vmem>>) attributes {dimension_semantics = [#tpu.dimension_semantics<parallel>], iteration_bounds = array<i64: 1>, scalar_prefetch = 0 : i64, scratch_operands = 0 : i64, tpu.core_type = #tpu.core_type<tc>, window_params = [{transform_indices = @transform_0, window_bounds = array<i64: 2, 16, 4>}, {pipeline_mode = #tpu.pipeline_mode<synchronous>, transform_indices = @transform_1, window_bounds = array<i64: 12, 128>}, {pipeline_mode = #tpu.pipeline_mode<synchronous>, transform_indices = @transform_2, window_bounds = array<i64: 1, 128>}, {transform_indices = @transform_3, window_bounds = array<i64: 2, 16, 128>}]} {
    %c0 = arith.constant 0 : index
    %c0_0 = arith.constant 0 : index
    %c0_1 = arith.constant 0 : index
    %0 = vector.load %arg1[%c0, %c0_0, %c0_1] : memref<2x16x4xf32, #tpu.memory_space<vmem>>, vector<2x16x4xf32>
    %c1_i32 = arith.constant 1 : i32
    %1 = tpu.dynamic_rotate %0 by %c1_i32 dim 1 : vector<2x16x4xf32>, i32 -> vector<2x16x4xf32>
    %c15_i32 = arith.constant 15 : i32
    %2 = tpu.dynamic_rotate %0 by %c15_i32 dim 1 : vector<2x16x4xf32>, i32 -> vector<2x16x4xf32>
    %3 = tpu.concatenate %1, %0, %2 in 2 : vector<2x16x4xf32>, vector<2x16x4xf32>, vector<2x16x4xf32> -> vector<2x16x12xf32>
    %4 = vector.shape_cast %3 : vector<2x16x12xf32> to vector<32x12xf32>
    %c0_2 = arith.constant 0 : index
    %c0_3 = arith.constant 0 : index
    %5 = vector.load %arg2[%c0_2, %c0_3] : memref<12x128xf32, #tpu.memory_space<vmem>>, vector<12x128xf32>
    %cst = arith.constant dense<0.000000e+00> : vector<32x128xf32>
    %6 = tpu.matmul %4, %5, %cst {dimension_numbers = #tpu.dot_dimension_numbers<[1], [0], [0], [1], [0, 0, 1, 1], [], []>} : vector<32x12xf32>, vector<12x128xf32>, vector<32x128xf32> -> vector<32x128xf32>
    %c0_4 = arith.constant 0 : index
    %c0_5 = arith.constant 0 : index
    %7 = vector.load %arg3[%c0_4, %c0_5] : memref<1x128xf32, #tpu.memory_space<vmem>>, vector<1x128xf32>
    %8 = vector.broadcast %7 : vector<1x128xf32> to vector<32x128xf32>
    %9 = arith.addf %6, %8 : vector<32x128xf32>
    %10 = vector.shape_cast %9 : vector<32x128xf32> to vector<2x16x128xf32>
    %c0_6 = arith.constant 0 : index
    %c0_7 = arith.constant 0 : index
    %c0_8 = arith.constant 0 : index
    %11 = vector.load %arg4[%c0_6, %c0_7, %c0_8] : memref<2x16x128xf32, #tpu.memory_space<vmem>>, vector<2x16x128xf32>
    tpu.vector_store %arg4[%c0_6, %c0_7, %c0_8], %10 {strides = array<i32>} : memref<2x16x128xf32, #tpu.memory_space<vmem>>, vector<2x16x128xf32>,
    return
  }
  func.func @transform_0(%arg0: i32) -> (i32, i32, i32) {
    %c0_i32 = arith.constant 0 : i32
    %c0_i32_0 = arith.constant 0 : i32
    %c0_i32_1 = arith.constant 0 : i32
    return %arg0, %c0_i32, %c0_i32_0 : i32, i32, i32
  }
  func.func @transform_1(%arg0: i32) -> (i32, i32) {
    %c0_i32 = arith.constant 0 : i32
    %c0_i32_0 = arith.constant 0 : i32
    %c0_i32_1 = arith.constant 0 : i32
    return %c0_i32, %c0_i32_0 : i32, i32
  }
  func.func @transform_2(%arg0: i32) -> (i32, i32) {
    %c0_i32 = arith.constant 0 : i32
    %c0_i32_0 = arith.constant 0 : i32
    %c0_i32_1 = arith.constant 0 : i32
    return %c0_i32, %c0_i32_0 : i32, i32
  }
  func.func @transform_3(%arg0: i32) -> (i32, i32, i32) {
    %c0_i32 = arith.constant 0 : i32
    %c0_i32_0 = arith.constant 0 : i32
    %c0_i32_1 = arith.constant 0 : i32
    return %arg0, %c0_i32, %c0_i32_0 : i32, i32, i32
  }
}

</mosaic_0001>

<llo_original>
// kernel: tpu_custom_call.1
$region0: #{tpu_custom_call.1}
  #allocation0 [shape = 'u32[]', space=smem, size = 0x4, offset = 0x4, fixed_abs, tag = 'smem constant byte address 0x4 - core index']
  #allocation1 [shape = 'u32[144,128]{1,0:T(1,128)}', space=vmem, size = 0x12000, scoped, tag = 'internal scratch']
  %s0 = inlined_call_operand.hbm [shape: f32[2,16,4], index: 0, kind: input, shape index: {}]
  %s1 = inlined_call_operand.hbm [shape: f32[12,128], index: 1, kind: input, shape index: {}]
  %s2 = inlined_call_operand.hbm [shape: f32[1,128], index: 2, kind: input, shape index: {}]
  %s3 = inlined_call_operand.hbm [shape: f32[2,16,128], index: 3, kind: output, shape index: {}]
  %s4 = sld [smem:[#allocation0]]
  $region34: #{tpu_custom_call.1} parent=0
    _
  %s6 = ssub.s32 1, %s4
  %s7 = scalar_select 0, %s6, %s4
  $region1: #{tpu_custom_call.1} parent=0
    #allocation2 [shape = 'u8[16384]{0}', space=vmem, size = 0x4000, scoped, tag = 'input window, operand 0, single buffered']
    #allocation3 [shape = 's32[1]{0}', space=sflag, size = 0x4, scoped, tag = 'scoped memory for tpu_custom_call.1']
    #allocation4 [shape = 's32[1]{0}', space=sflag, size = 0x4, scoped, tag = 'scoped memory for tpu_custom_call.1']
    #allocation5 [shape = 'u8[8192]{0}', space=vmem, size = 0x2000, scoped, tag = 'input window, operand 1, single buffered']
    #allocation6 [shape = 's32[1]{0}', space=sflag, size = 0x4, scoped, tag = 'scoped memory for tpu_custom_call.1']
    #allocation7 [shape = 'u8[512]{0}', space=vmem, size = 0x400, scoped, tag = 'input window, operand 2, single buffered']
    #allocation8 [shape = 'u8[16384]{0}', space=vmem, size = 0x4000, scoped, tag = 'output window, operand 0, single buffered']
    %8 = vsyncpa [#allocation3], 0
    %9 = vsyncpa [#allocation6], 0
    %10 = vsyncpa [#allocation4], 0
    // Predicated region
    $region2: #{tpu_custom_call.1} parent=1 // pred_check
      _
    $region3: #{tpu_custom_call.1} parent=1 // pred_check_branch
      %12 = sbr.rel (0) target = $region5
    $region4: #{tpu_custom_call.1} parent=1 // pred_region
      %s14 = ssub.s32 512, 512
      %15 = vsyncadd [#allocation3], %s14
      %s16 = sshll.u32 [#allocation2], 4
      %s17 = int_to_ptr.vmem [resolvable:$true] %s16
      %22 = dma.hbm_to_vmem [thread:$0]  %s0, 512, %s17, [#allocation3], 128, 128, 8
    $region5: #{tpu_custom_call.1} parent=1 // pred_fallthru
      _
    // Predicated region
    $region6: #{tpu_custom_call.1} parent=1 // pred_check
      _
    $region7: #{tpu_custom_call.1} parent=1 // pred_check_branch
      %24 = sbr.rel (0) target = $region9
    $region8: #{tpu_custom_call.1} parent=1 // pred_region
      %s26 = ssub.s32 256, 256
      %27 = vsyncadd [#allocation6], %s26
      %s28 = sshll.u32 [#allocation5], 4
      %s29 = int_to_ptr.vmem [resolvable:$true] %s28
      %34 = dma.hbm_to_vmem [thread:$0]  %s1, 256, %s29, [#allocation6], 128, 128, 8
    $region9: #{tpu_custom_call.1} parent=1 // pred_fallthru
      _
    // Predicated region
    $region10: #{tpu_custom_call.1} parent=1 // pred_check
      _
    $region11: #{tpu_custom_call.1} parent=1 // pred_check_branch
      %36 = sbr.rel (0) target = $region13
    $region12: #{tpu_custom_call.1} parent=1 // pred_region
      %s38 = ssub.s32 16, 16
      %39 = vsyncadd [#allocation6], %s38
      %s41 = sshll.u32 [#allocation7], 4
      %s42 = int_to_ptr.vmem [resolvable:$true] %s41
      %44 = dma.hbm_to_vmem [thread:$0]  %s2, 16, %s42, [#allocation6]
    $region13: #{tpu_custom_call.1} parent=1 // pred_fallthru
      _
    // Predicated region
    $region14: #{tpu_custom_call.1} parent=1 // pred_check
      _
    $region15: #{tpu_custom_call.1} parent=1 // pred_check_branch
      %46 = sbr.rel (0) target = $region17
    $region16: #{tpu_custom_call.1} parent=1 // pred_region
      %47 = dma.done [#allocation3], 512
    $region17: #{tpu_custom_call.1} parent=1 // pred_fallthru
      _
    // Predicated region
    $region18: #{tpu_custom_call.1} parent=1 // pred_check
      _
    $region19: #{tpu_custom_call.1} parent=1 // pred_check_branch
      %49 = sbr.rel (0) target = $region21
    $region20: #{tpu_custom_call.1} parent=1 // pred_region
      %50 = dma.done [#allocation6], 256
    $region21: #{tpu_custom_call.1} parent=1 // pred_fallthru
      _
    // Predicated region
    $region22: #{tpu_custom_call.1} parent=1 // pred_check
      _
    $region23: #{tpu_custom_call.1} parent=1 // pred_check_branch
      %52 = sbr.rel (0) target = $region25
    $region24: #{tpu_custom_call.1} parent=1 // pred_region
      %53 = dma.done [#allocation6], 16
    $region25: #{tpu_custom_call.1} parent=1 // pred_fallthru
      _
    %v54 = vld [vmem:[#allocation2] sm:$0xff]
    %v55 = vld [vmem:[#allocation2 + $0x8] sm:$0xff]
    %v56 = vld [vmem:[#allocation2 + $0x10] sm:$0xff]
    %v57 = vld [vmem:[#allocation2 + $0x18] sm:$0xff]
    %v58 = vrot.slane %v54, 7
    %v59 = vrot.slane %v56, 7
    %v60 = vrot.slane %v55, 7
    %v61 = vrot.slane %v57, 7
    %v62 = vlaneseq
    %v63 = vshrl.u32 %v62, 7
    %vm64 = vcmp.lt.s32.totalorder %v63, 1
    %v65 = vsel %vm64, %v58, %v60
    %v66 = vsel %vm64, %v59, %v61
    %v67 = vsel %vm64, %v60, %v58
    %v68 = vsel %vm64, %v61, %v59
    %v69 = vrot.slane %v54, 1
    %v70 = vrot.slane %v56, 1
    %v71 = vrot.slane %v55, 1
    %v72 = vrot.slane %v57, 1
    %vm73 = vcmp.lt.s32.totalorder %v63, 7
    %v74 = vsel %vm73, %v69, %v71
    %v75 = vsel %vm73, %v70, %v72
    %v76 = vsel %vm73, %v71, %v69
    %v77 = vsel %vm73, %v72, %v70
    %82 = vrot.lane.b32.xlu0 %v54, 4
    %v83 = vpop.permute.xlu0 %82
    %84 = vrot.lane.b32.xlu0 %v55, 4
    %v85 = vpop.permute.xlu0 %84
    %86 = vrot.lane.b32.xlu0 %v56, 4
    %v87 = vpop.permute.xlu0 %86
    %88 = vrot.lane.b32.xlu0 %v57, 4
    %v89 = vpop.permute.xlu0 %88
    %98 = vrot.lane.b32.xlu0 %v74, 8
    %v99 = vpop.permute.xlu0 %98
    %100 = vrot.lane.b32.xlu0 %v76, 8
    %v101 = vpop.permute.xlu0 %100
    %102 = vrot.lane.b32.xlu0 %v75, 8
    %v103 = vpop.permute.xlu0 %102
    %104 = vrot.lane.b32.xlu0 %v77, 8
    %v105 = vpop.permute.xlu0 %104
    %vm110 = vcmask 31744
    %v111 = vsel %vm110, %v67, %v83
    %v112 = vsel %vm110, %v65, %v85
    %v113 = vsel %vm110, %v68, %v87
    %v114 = vsel %vm110, %v66, %v89
    %vm115 = vcmask 64512
    %v116 = vsel %vm115, %v111, %v99
    %v117 = vsel %vm115, %v112, %v101
    %v118 = vsel %vm115, %v113, %v103
    %v119 = vsel %vm115, %v114, %v105
    %v120 = vld [vmem:[#allocation5] sm:$0xff]
    %v121 = vld [vmem:[#allocation5 + $0x8] sm:$0xf]
    %v122 = vld [vmem:[#allocation7] sm:$0x1]
    %v124 = vlaneseq
    %v125 = vshrl.u32 %v124, 7
    %v126 = vsub.s32 0, %v125
    %v127 = vrot.slane %v122, %v126
    %vm129 = vcmask 97280
    %v131 = vsel %vm129, %v116, 0
    %v134 = vsel %vm129, %v117, 0
    %v137 = vsel %vm129, %v118, 0
    %v140 = vsel %vm129, %v119, 0
    %vm142 = vcmask 1043456
    %v144 = vsel %vm142, %v121, 0
    %146 = vmatprep.subr.mxu0 0.0
    %147 = vmatpush1.msra.mxu0 %v120
    %148 = vmatprep.subr.mxu0 0.0
    %149 = vmatpush1.msra.mxu0 %v144
    %150 = vmatprep.subr.mxu0 0.0
    %151 = vmatpush1.msra.mxu0 0.0
    %152 = vmatprep.subr.mxu0 0.0
    %153 = vmatpush1.msra.mxu0 0.0
    %154 = vmatprep.subr.mxu0 0.0
    %155 = vmatpush1.msra.mxu0 0.0
    %156 = vmatprep.subr.mxu0 0.0
    %157 = vmatpush1.msra.mxu0 0.0
    %158 = vmatprep.subr.mxu0 0.0
    %159 = vmatpush1.msra.mxu0 0.0
    %160 = vmatprep.subr.mxu0 0.0
    %161 = vmatpush1.msra.mxu0 0.0
    %162 = vmatprep.subr.mxu0 0.0
    %163 = vmatpush1.msra.mxu0 0.0
    %164 = vmatprep.subr.mxu0 0.0
    %165 = vmatpush1.msra.mxu0 0.0
    %166 = vmatprep.subr.mxu0 0.0
    %167 = vmatpush1.msra.mxu0 0.0
    %168 = vmatprep.subr.mxu0 0.0
    %169 = vmatpush1.msra.mxu0 0.0
    %170 = vmatprep.subr.mxu0 0.0
    %171 = vmatpush1.msra.mxu0 0.0
    %172 = vmatprep.subr.mxu0 0.0
    %173 = vmatpush1.msra.mxu0 0.0
    %174 = vmatprep.subr.mxu0 0.0
    %175 = vmatpush1.msra.mxu0 0.0
    %176 = vmatprep.subr.mxu0 0.0
    %177 = vmatpush1.msra.mxu0 0.0
    %178 = vmatprep.subr.mxu0 0.0
    %179 = vmatpush1.msra.mxu0 0.0
    %180 = vmatprep.subr.mxu0 0.0
    %181 = vmatpush1.msra.mxu0 0.0
    %182 = vmatprep.subr.mxu0 0.0
    %183 = vmatpush1.msra.mxu0 0.0
    %184 = vmatprep.subr.mxu0 0.0
    %185 = vmatpush1.msra.mxu0 0.0
    %186 = vmatprep.subr.mxu0 0.0
    %187 = vmatpush1.msra.mxu0 0.0
    %188 = vmatprep.subr.mxu0 0.0
    %189 = vmatpush1.msra.mxu0 0.0
    %190 = vmatprep.subr.mxu0 0.0
    %191 = vmatpush1.msra.mxu0 0.0
    %192 = vmatprep.subr.mxu0 0.0
    %193 = vmatpush1.msra.mxu0 0.0
    %194 = vmatprep.subr.mxu0 0.0
    %195 = vmatpush1.msra.mxu0 0.0
    %196 = vmatprep.subr.mxu0 0.0
    %197 = vmatpush1.msra.mxu0 0.0
    %198 = vmatprep.subr.mxu0 0.0
    %199 = vmatpush1.msra.mxu0 0.0
    %200 = vmatprep.subr.mxu0 0.0
    %201 = vmatpush1.msra.mxu0 0.0
    %202 = vmatprep.subr.mxu0 0.0
    %203 = vmatpush1.msra.mxu0 0.0
    %204 = vmatprep.subr.mxu0 0.0
    %205 = vmatpush1.msra.mxu0 0.0
    %206 = vmatprep.subr.mxu0 0.0
    %207 = vmatpush1.msra.mxu0 0.0
    %208 = vmatprep.subr.mxu0 0.0
    %209 = vmatpush1.msra.mxu0 0.0
    %210 = vmatprep.mubr.f32.mxu0 0.0
    %211 = vmatmul.mubr.f32.gmra.mrb[0].mxu0 %v131
    %v212 = vpop.f32.mrb[0].mxu0
    %v213 = vadd.f32 %v127, %v212
    %v214 = vpop.f32.mrb[0].mxu0
    %215 = vmatprep.mubr.f32.mxu0 0.0
    %216 = vmatmul.mubr.f32.gmra.mrb[0].mxu0 %v134
    %v217 = vpop.f32.mrb[0].mxu0
    %v218 = vadd.f32 %v127, %v217
    %v219 = vpop.f32.mrb[0].mxu0
    %220 = vmatprep.mubr.f32.mxu0 0.0
    %221 = vmatmul.mubr.f32.gmra.mrb[0].mxu0 %v137
    %v222 = vpop.f32.mrb[0].mxu0
    %v223 = vadd.f32 %v127, %v222
    %v224 = vpop.f32.mrb[0].mxu0
    %225 = vmatprep.mubr.f32.mxu0 0.0
    %226 = vmatmul.mubr.f32.gmra.mrb[0].mxu0 %v140
    %v227 = vpop.f32.mrb[0].mxu0
    %v228 = vadd.f32 %v127, %v227
    %v229 = vpop.f32.mrb[0].mxu0
    %230 = vdwg.mxu0
    %231 = vst [vmem:[#allocation8] sm:$0xff] %v213
    %232 = vst [vmem:[#allocation8 + $0x8] sm:$0xff] %v218
    %233 = vst [vmem:[#allocation8 + $0x10] sm:$0xff] %v223
    %234 = vst [vmem:[#allocation8 + $0x18] sm:$0xff] %v228
    // Predicated region
    $region26: #{tpu_custom_call.1} parent=1 // pred_check
      _
    $region27: #{tpu_custom_call.1} parent=1 // pred_check_branch
      %236 = sbr.rel (0) target = $region29
    $region28: #{tpu_custom_call.1} parent=1 // pred_region
      %s238 = ssub.s32 512, 512
      %239 = vsyncadd [#allocation4], %s238
      %s240 = sshll.u32 [#allocation8], 4
      %s241 = int_to_ptr.vmem [resolvable:$true] %s240
      %246 = dma.vmem_to_hbm [thread:$0]  %s241, 512, %s3, [#allocation4], 128, 128, 8
    $region29: #{tpu_custom_call.1} parent=1 // pred_fallthru
      _
    // Predicated region
    $region30: #{tpu_custom_call.1} parent=1 // pred_check
      _
    $region31: #{tpu_custom_call.1} parent=1 // pred_check_branch
      %248 = sbr.rel (0) target = $region33
    $region32: #{tpu_custom_call.1} parent=1 // pred_region
      %249 = dma.done [#allocation4], 512
    $region33: #{tpu_custom_call.1} parent=1 // pred_fallthru
      _
    %250 = vsyncpa [#allocation3], 1
    %251 = vsyncpa [#allocation6], 1
    %252 = vsyncpa [#allocation4], 1

</llo_original>
